<compile_context>
chip_gen: v7x
topology: tpu7x:2x2x1
jax: 0.10.0
libtpu: 0.0.40
codegen_flags: <defaults>
</compile_context>

<pallas_src>
import functools

import jax
import jax.numpy as jnp
from jax.experimental import pallas as pl
from jax.experimental.pallas import tpu as pltpu


def _round_up(x, m):
    return ((x + m - 1) // m) * m


def _vmem_capacity_bytes():
    try:
        info = pltpu.get_tpu_info()
        cap = getattr(info, "vmem_capacity_bytes", None)
        if cap:
            return int(cap)
    except Exception:
        pass
    return 64 * 1024 * 1024  # conservative fallback (v7x per-TensorCore VMEM)


def _soft_ce_kernel(x_ref, labels_ref, out_ref, *, n_global, inv_n, inv_cn):
    """One batch tile -> this tile's (pre-scaled) partial loss sum.

    x_ref:      (TM, C) logits tile (f32 or bf16; accumulation in f32)
    labels_ref: (TM, 1) int32 class indices
    out_ref:    (8, 128) f32 partial, broadcast over the block (lane-dense store)
    """
    i = pl.program_id(0)
    x = x_ref[...]                                   # native dtype, no full-tile cast
    tm, c = x.shape
    labels = labels_ref[...]                         # (TM, 1) int32

    # Numerically stable per-row statistics; casts fuse per-vreg into the reductions.
    m = jnp.max(x, axis=1, keepdims=True)                                     # (TM,1)
    s = jnp.sum(jnp.exp((x - m).astype(jnp.float32)), axis=1, keepdims=True)  # (TM,1)
    lse = m.astype(jnp.float32) + jnp.log(s)                                  # (TM,1)
    xsum = jnp.sum(x, axis=1, keepdims=True, dtype=jnp.float32)               # (TM,1)
    # TODO(synk): if a bundle dump shows VALU-bound (v7x f32 / v6e bf16), offload xsum
    #             to the idle MXU via jnp.dot(x, ones((C,1)), preferred_element_type=f32).

    # x[i, label_i] via select + row-sum (no one-hot materialization).
    col = jax.lax.broadcasted_iota(jnp.int32, (tm, c), 1)
    xlab = jnp.sum(jnp.where(col == labels, x, 0), axis=1, keepdims=True,
                   dtype=jnp.float32)                                         # (TM,1)

    # CE term + soft term, already scaled by the global 1/N and 1/(C*N).
    contrib = (lse - xlab) * inv_n + (jnp.float32(c) * lse - xsum) * inv_cn   # (TM,1)

    # Mask rows past the true batch size (ragged last tile: OOB rows hold garbage,
    # but the select keeps anything — including Inf/NaN — out of the sum).
    row = jax.lax.broadcasted_iota(jnp.int32, (tm, 1), 0) + i * tm
    contrib = jnp.where(row < n_global, contrib, 0.0)

    partial = jnp.sum(contrib, axis=0, keepdims=True)                         # (1,1)
    out_ref[...] = jnp.broadcast_to(partial, out_ref.shape)


def soft_cross_entropy(inputs, labels, *, tile_rows=None):
    """inputs: (N, C) float logits (f32 or bf16); labels: (N,) int class indices.

    Returns scalar f32: CrossEntropyLoss(inputs, labels) + mean(-log_softmax(inputs)).
    """
    n, c = inputs.shape
    itemsize = jnp.dtype(inputs.dtype).itemsize
    vmem_cap = _vmem_capacity_bytes()
    # Per-row VMEM cost: one logits row + one lane-padded (x,1) int32 label row.
    per_row_bytes = c * itemsize + 128 * 4

    if tile_rows is None:
        # Largest double-buffered batch tile that fits comfortably in this
        # generation's VMEM (labels block included in the budget).
        budget = int(vmem_cap * 0.35)
        tile_rows = budget // (2 * per_row_bytes)      # 2 = double buffering
    tile_rows = max(8, int(tile_rows) - int(tile_rows) % 8)
    # Keep every block start in-bounds; only the last block may be ragged.
    tile_rows = min(tile_rows, max(8, (n // 8) * 8))

    num_tiles = (n + tile_rows - 1) // tile_rows

    # Logits stream unpadded (no HBM copy); the tiny labels array is padded so its
    # blocks stay fully in bounds. Tiny-batch (N < 8) edge case pads a few rows.
    x = inputs
    if n < tile_rows:
        x = jnp.pad(x, ((0, tile_rows - n), (0, 0)))
    lbl = labels.astype(jnp.int32).reshape(n, 1)
    n_lbl = num_tiles * tile_rows
    if n_lbl != n:
        lbl = jnp.pad(lbl, ((0, n_lbl - n), (0, 0)))

    kernel = functools.partial(
        _soft_ce_kernel, n_global=n, inv_n=1.0 / n, inv_cn=1.0 / (c * n))

    vmem_needed = 2 * tile_rows * per_row_bytes + 2 * 8 * 128 * 4 + (1 << 20)
    vmem_limit = min(max(vmem_needed, 32 * 1024 * 1024), int(vmem_cap * 0.92))

    cost = pl.CostEstimate(
        flops=8 * n * c,
        transcendentals=n * c + n,
        bytes_accessed=n * c * itemsize + n * 4 + num_tiles * 8 * 128 * 4,
    )

    partials = pl.pallas_call(
        kernel,
        out_shape=jax.ShapeDtypeStruct((num_tiles * 8, 128), jnp.float32),
        grid_spec=pltpu.PrefetchScalarGridSpec(
            num_scalar_prefetch=0,
            grid=(num_tiles,),
            in_specs=[
                pl.BlockSpec((tile_rows, c), lambda i: (i, 0)),
                pl.BlockSpec((tile_rows, 1), lambda i: (i, 0)),
            ],
            out_specs=pl.BlockSpec((8, 128), lambda i: (i, 0)),
        ),
        compiler_params=pltpu.CompilerParams(
            dimension_semantics=("parallel",),
            vmem_limit_bytes=int(vmem_limit),
        ),
        cost_estimate=cost,
    )(x, lbl)

    # Cheap final reduction over per-tile partials (each block is the broadcast partial).
    return jnp.sum(partials.reshape(num_tiles, 8, 128)[:, 0, 0])


def _reference(inputs, labels):
    x = inputs.astype(jnp.float32)
    n, c = x.shape
    logp = jax.nn.log_softmax(x, axis=1)
    ce = -jnp.mean(logp[jnp.arange(n), labels])
    soft = jnp.sum(-logp) / c / n
    return ce + soft


if __name__ == "__main__":
    key = jax.random.PRNGKey(0)
    k1, k2 = jax.random.split(key)
    # N not a multiple of the tile -> exercises the pad-free ragged last tile + mask.
    N, C = 30, 128
    inputs = jax.random.normal(k1, (N, C), dtype=jnp.float32)
    labels = jax.random.randint(k2, (N,), 0, C, dtype=jnp.int32)

    ref = _reference(inputs, labels)

    # Multi-step grid with per-tile parallel partials.
    loss = soft_cross_entropy(inputs, labels, tile_rows=8)
    jax.block_until_ready(loss)
    assert jnp.allclose(loss, ref, rtol=1e-5, atol=1e-5), (loss, ref)

    # Default VMEM-derived tile sizing path.
    loss2 = soft_cross_entropy(inputs, labels)
    jax.block_until_ready(loss2)
    assert jnp.allclose(loss2, ref, rtol=1e-5, atol=1e-5), (loss2, ref)

    print("KERNEL_OK")
</pallas_src>

<mosaic_0001>
module attributes {stable_mosaic.version = 11 : i64} {
  func.func @_soft_ce_kernel(%arg0: i32, %arg1: memref<8x128xf32, #tpu.memory_space<vmem>>, %arg2: memref<8x1xi32, #tpu.memory_space<vmem>>, %arg3: memref<8x128xf32, #tpu.memory_space<vmem>>) attributes {dimension_semantics = [#tpu.dimension_semantics<parallel>], iteration_bounds = array<i64: 4>, scalar_prefetch = 0 : i64, scratch_operands = 0 : i64, tpu.core_type = #tpu.core_type<tc>, window_params = [{transform_indices = @transform_0, window_bounds = array<i64: 8, 128>}, {transform_indices = @transform_1, window_bounds = array<i64: 8, 1>}, {transform_indices = @transform_2, window_bounds = array<i64: 8, 128>}]} {
    %c0 = arith.constant 0 : index
    %c0_0 = arith.constant 0 : index
    %0 = vector.load %arg1[%c0, %c0_0] : memref<8x128xf32, #tpu.memory_space<vmem>>, vector<8x128xf32>
    %c0_1 = arith.constant 0 : index
    %c0_2 = arith.constant 0 : index
    %1 = vector.load %arg2[%c0_1, %c0_2] : memref<8x1xi32, #tpu.memory_space<vmem>>, vector<8x1xi32>
    %cst = arith.constant dense<0xFF800000> : vector<8xf32>
    %2 = vector.multi_reduction <maximumf>, %0, %cst [1] : vector<8x128xf32> to vector<8xf32>
    %3 = vector.shape_cast %2 : vector<8xf32> to vector<8x1xf32>
    %4 = vector.broadcast %3 : vector<8x1xf32> to vector<8x128xf32>
    %5 = arith.subf %0, %4 : vector<8x128xf32>
    %6 = math.exp %5 : vector<8x128xf32>
    %cst_3 = arith.constant dense<0.000000e+00> : vector<8xf32>
    %7 = vector.multi_reduction <add>, %6, %cst_3 [1] : vector<8x128xf32> to vector<8xf32>
    %8 = vector.shape_cast %7 : vector<8xf32> to vector<8x1xf32>
    %9 = math.log %8 : vector<8x1xf32>
    %10 = arith.addf %3, %9 : vector<8x1xf32>
    %cst_4 = arith.constant dense<0.000000e+00> : vector<8xf32>
    %11 = vector.multi_reduction <add>, %0, %cst_4 [1] : vector<8x128xf32> to vector<8xf32>
    %12 = vector.shape_cast %11 : vector<8xf32> to vector<8x1xf32>
    %13 = tpu.iota {dimensions = array<i32: 1>} : vector<8x128xi32>
    %14 = vector.broadcast %1 : vector<8x1xi32> to vector<8x128xi32>
    %15 = arith.cmpi eq, %13, %14 : vector<8x128xi32>
    %c0_i32 = arith.constant 0 : i32
    %16 = arith.sitofp %c0_i32 : i32 to f32
    %17 = vector.broadcast %16 : f32 to vector<8x128xf32>
    %18 = arith.select %15, %0, %17 : vector<8x128xi1>, vector<8x128xf32>
    %cst_5 = arith.constant dense<0.000000e+00> : vector<8xf32>
    %19 = vector.multi_reduction <add>, %18, %cst_5 [1] : vector<8x128xf32> to vector<8xf32>
    %20 = vector.shape_cast %19 : vector<8xf32> to vector<8x1xf32>
    %21 = arith.subf %10, %20 : vector<8x1xf32>
    %cst_6 = arith.constant 0.0333333351 : f32
    %22 = vector.broadcast %cst_6 : f32 to vector<8x1xf32>
    %23 = arith.mulf %21, %22 : vector<8x1xf32>
    %cst_7 = arith.constant 1.280000e+02 : f32
    %24 = vector.broadcast %cst_7 : f32 to vector<8x1xf32>
    %25 = arith.mulf %24, %10 : vector<8x1xf32>
    %26 = arith.subf %25, %12 : vector<8x1xf32>
    %cst_8 = arith.constant 2.6041668E-4 : f32
    %27 = vector.broadcast %cst_8 : f32 to vector<8x1xf32>
    %28 = arith.mulf %26, %27 : vector<8x1xf32>
    %29 = arith.addf %23, %28 : vector<8x1xf32>
    %30 = tpu.iota {dimensions = array<i32: 0>} : vector<8x1xi32>
    %c8_i32 = arith.constant 8 : i32
    %31 = arith.muli %arg0, %c8_i32 : i32
    %32 = vector.broadcast %31 : i32 to vector<8x1xi32>
    %33 = arith.addi %30, %32 : vector<8x1xi32>
    %c30_i32 = arith.constant 30 : i32
    %34 = vector.broadcast %c30_i32 : i32 to vector<8x1xi32>
    %35 = arith.cmpi slt, %33, %34 : vector<8x1xi32>
    %cst_9 = arith.constant 0.000000e+00 : f32
    %36 = vector.broadcast %cst_9 : f32 to vector<8x1xf32>
    %37 = arith.select %35, %29, %36 : vector<8x1xi1>, vector<8x1xf32>
    %cst_10 = arith.constant dense<0.000000e+00> : vector<1xf32>
    %38 = vector.multi_reduction <add>, %37, %cst_10 [0] : vector<8x1xf32> to vector<1xf32>
    %39 = vector.shape_cast %38 : vector<1xf32> to vector<1x1xf32>
    %40 = vector.shape_cast %39 : vector<1x1xf32> to vector<1x1xf32>
    %41 = vector.broadcast %40 : vector<1x1xf32> to vector<8x128xf32>
    %c0_11 = arith.constant 0 : index
    %c0_12 = arith.constant 0 : index
    %42 = vector.load %arg3[%c0_11, %c0_12] : memref<8x128xf32, #tpu.memory_space<vmem>>, vector<8x128xf32>
    tpu.vector_store %arg3[%c0_11, %c0_12], %41 {strides = array<i32>} : memref<8x128xf32, #tpu.memory_space<vmem>>, vector<8x128xf32>,
    return
  }
  func.func @transform_0(%arg0: i32) -> (i32, i32) {
    %c0_i32 = arith.constant 0 : i32
    %c0_i32_0 = arith.constant 0 : i32
    return %arg0, %c0_i32 : i32, i32
  }
  func.func @transform_1(%arg0: i32) -> (i32, i32) {
    %c0_i32 = arith.constant 0 : i32
    %c0_i32_0 = arith.constant 0 : i32
    return %arg0, %c0_i32 : i32, i32
  }
  func.func @transform_2(%arg0: i32) -> (i32, i32) {
    %c0_i32 = arith.constant 0 : i32
    %c0_i32_0 = arith.constant 0 : i32
    return %arg0, %c0_i32 : i32, i32
  }
}

</mosaic_0001>

<llo_original>
// kernel: tpu_custom_call.1
$region0: #{tpu_custom_call.1}
  #allocation0 [shape = 'u32[]', space=smem, size = 0x4, offset = 0x4, fixed_abs, tag = 'smem constant byte address 0x4 - core index']
  #allocation1 [shape = 'u32[144,128]{1,0:T(1,128)}', space=vmem, size = 0x12000, scoped, tag = 'internal scratch']
  %s0 = inlined_call_operand.vmem [shape: f32[30,128], index: 0, kind: input, shape index: {}]
  %s1 = inlined_call_operand.vmem [shape: s32[32,1], index: 1, kind: input, shape index: {}]
  %s2 = inlined_call_operand.hbm [shape: f32[32,128], index: 2, kind: output, shape index: {}]
  %s3 = sld [smem:[#allocation0]]
  $region41: #{tpu_custom_call.1} parent=0
    _
  %s5 = ssub.s32 1, %s3
  %s6 = scalar_select 0, %s5, %s3
  $region1: #{tpu_custom_call.1} parent=0
    #allocation2 [shape = 'u8[8192]{0}', space=vmem, size = 0x2000, scoped, tag = 'output window, operand 0']
    #allocation3 [shape = 's32[2]{0}', space=sflag, size = 0x8, scoped, tag = 'scoped memory for tpu_custom_call.1']
    %7 = vsyncpa [#allocation3], 0
    %s8 = scalar_lea.sflag [#allocation3], 1
    %9 = vsyncpa %s8, 0
    loop: start=0, step=1, limit=6
    $region2: #{tpu_custom_call.1} parent=1 // loop_pre_header
      _
    $region3: #{tpu_custom_call.1} parent=1 // loop_header
      %s11 = sphi 0, %s15
      %p12 = scmp.ge.s32.totalorder %s11, 6
      %s21 = sphi 0, %s23
      %s24 = sphi 0, %s21
      %s25 = sphi 0, %s24
      %s41 = sphi 0, %s25
      %s47 = sphi 0, %s49
      %s50 = sphi 0, %s47
      %s51 = sphi 0, %s50
      %s67 = sphi 0, %s51
      %s73 = sphi 0, %s75
      %s76 = sphi 0, %s73
      %s77 = sphi 0, %s76
      %s93 = sphi 0, %s77
    $region4: #{tpu_custom_call.1} parent=1 // loop_header_branch
      %14 = sbr.rel (%p12) target = $region8
    $region5: #{tpu_custom_call.1} parent=1 // loop_body
      %s16 = ssub.s32 %s11, 1
      %s17 = ssub.s32 %s11, 2
      %s18 = sadd.s32 %s11, 1
      %s19 = ssub.s32 %s11, %s18
      %p20 = scmp.eq.s32.totalorder %s19, 0
      %s22 = sadd.s32 %s21, 1
      %s23 = scalar_select %p20, %s21, %s22
      %p26 = pneg %p20
      %p27 = scmp.eq.s32.totalorder %s11, 3
      %p28 = por %p26, %p27
      %p29 = scmp.ne.s32.totalorder %s21, %s24
      %p30 = scmp.eq.s32.totalorder %s11, 0
      %p31 = por %p29, %p30
      %p32 = scmp.ne.s32.totalorder %s21, %s24
      %p33 = scmp.eq.s32.totalorder %s16, 3
      %p34 = por %p32, %p33
      %p35 = scmp.ne.s32.totalorder %s24, %s25
      %p36 = scmp.eq.s32.totalorder %s16, 0
      %p37 = por %p35, %p36
      %p38 = scmp.ne.s32.totalorder %s24, %s25
      %p39 = scmp.eq.s32.totalorder %s17, 3
      %p40 = por %p38, %p39
      %p42 = scmp.ne.s32.totalorder %s25, %s41
      %p43 = scmp.eq.s32.totalorder %s17, 0
      %p44 = por %p42, %p43
      %s45 = ssub.s32 %s11, %s18
      %p46 = scmp.eq.s32.totalorder %s45, 0
      %s48 = sadd.s32 %s47, 1
      %s49 = scalar_select %p46, %s47, %s48
      %p52 = pneg %p46
      %p53 = scmp.eq.s32.totalorder %s11, 3
      %p54 = por %p52, %p53
      %p55 = scmp.ne.s32.totalorder %s47, %s50
      %p56 = scmp.eq.s32.totalorder %s11, 0
      %p57 = por %p55, %p56
      %p58 = scmp.ne.s32.totalorder %s47, %s50
      %p59 = scmp.eq.s32.totalorder %s16, 3
      %p60 = por %p58, %p59
      %p61 = scmp.ne.s32.totalorder %s50, %s51
      %p62 = scmp.eq.s32.totalorder %s16, 0
      %p63 = por %p61, %p62
      %p64 = scmp.ne.s32.totalorder %s50, %s51
      %p65 = scmp.eq.s32.totalorder %s17, 3
      %p66 = por %p64, %p65
      %p68 = scmp.ne.s32.totalorder %s51, %s67
      %p69 = scmp.eq.s32.totalorder %s17, 0
      %p70 = por %p68, %p69
      %s71 = ssub.s32 %s11, %s18
      %p72 = scmp.eq.s32.totalorder %s71, 0
      %s74 = sadd.s32 %s73, 1
      %s75 = scalar_select %p72, %s73, %s74
      %p78 = pneg %p72
      %p79 = scmp.eq.s32.totalorder %s11, 3
      %p80 = por %p78, %p79
      %p81 = scmp.ne.s32.totalorder %s73, %s76
      %p82 = scmp.eq.s32.totalorder %s11, 0
      %p83 = por %p81, %p82
      %p84 = scmp.ne.s32.totalorder %s73, %s76
      %p85 = scmp.eq.s32.totalorder %s16, 3
      %p86 = por %p84, %p85
      %p87 = scmp.ne.s32.totalorder %s76, %s77
      %p88 = scmp.eq.s32.totalorder %s16, 0
      %p89 = por %p87, %p88
      %p90 = scmp.ne.s32.totalorder %s76, %s77
      %p91 = scmp.eq.s32.totalorder %s17, 3
      %p92 = por %p90, %p91
      %p94 = scmp.ne.s32.totalorder %s77, %s93
      %p95 = scmp.eq.s32.totalorder %s17, 0
      %p96 = por %p94, %p95
      %p97 = scmp.le.s32.totalorder 1, %s11
      %p98 = scmp.lt.s32.totalorder %s11, 5
      %p99 = pnand %p97, %p98
      %p100 = pneg %p99
      // Predicated region
      $region9: #{tpu_custom_call.1} parent=5 // pred_check
        _
      $region10: #{tpu_custom_call.1} parent=5 // pred_check_branch
        %102 = sbr.rel (%p99) target = $region12
      $region11: #{tpu_custom_call.1} parent=5 // pred_region
        %s103 = ssub.s32 %s11, 1
      $region12: #{tpu_custom_call.1} parent=5 // pred_fallthru
        _
      %p104 = scmp.lt.s32.totalorder %s11, 4
      // Predicated region
      $region13: #{tpu_custom_call.1} parent=5 // pred_check
        %p105 = pneg %p104
      $region14: #{tpu_custom_call.1} parent=5 // pred_check_branch
        %107 = sbr.rel (%p105) target = $region16
      $region15: #{tpu_custom_call.1} parent=5 // pred_region
        // Predicated region
        $region17: #{tpu_custom_call.1} parent=15 // pred_check
          %p108 = pneg %p31
        $region18: #{tpu_custom_call.1} parent=15 // pred_check_branch
          %110 = sbr.rel (%p108) target = $region20
        $region19: #{tpu_custom_call.1} parent=15 // pred_region
          %p111 = scmp.lt.s32.totalorder %s11, 3
          %s112 = scalar_select %p111, %s11, 3
          %s113 = smul.addr %s112, 8
          %s114 = scalar_lea.vmem %s0, %s113
        $region20: #{tpu_custom_call.1} parent=15 // pred_fallthru
          _
        // Predicated region
        $region21: #{tpu_custom_call.1} parent=15 // pred_check
          %p115 = pneg %p57
        $region22: #{tpu_custom_call.1} parent=15 // pred_check_branch
          %117 = sbr.rel (%p115) target = $region24
        $region23: #{tpu_custom_call.1} parent=15 // pred_region
          %p118 = scmp.lt.s32.totalorder %s11, 3
          %s119 = scalar_select %p118, %s11, 3
          %s120 = smul.addr %s119, 8
          %s121 = scalar_lea.vmem %s1, %s120
        $region24: #{tpu_custom_call.1} parent=15 // pred_fallthru
          _
      $region16: #{tpu_custom_call.1} parent=5 // pred_fallthru
        _
      %p122 = scmp.le.s32.totalorder 1, %s11
      %p123 = scmp.lt.s32.totalorder %s11, 5
      %p124 = pnand %p122, %p123
      %p125 = pneg %p124
      // Predicated region
      $region25: #{tpu_custom_call.1} parent=5 // pred_check
        _
      $region26: #{tpu_custom_call.1} parent=5 // pred_check_branch
        %127 = sbr.rel (%p124) target = $region28
      $region27: #{tpu_custom_call.1} parent=5 // pred_region
        %s128 = ssub.s32 %s11, 1
        %p129 = scmp.lt.s32.totalorder %s16, 3
        %s130 = scalar_select %p129, %s16, 3
        %s131 = smul.addr %s130, 8
        %s132 = scalar_lea.vmem %s0, %s131
        %p133 = pneg %p37
        %p134 = pneg %p34
        %p135 = scmp.lt.s32.totalorder %s16, 3
        %s136 = scalar_select %p135, %s16, 3
        %s137 = smul.addr %s136, 8
        %s138 = scalar_lea.vmem %s1, %s137
        %p139 = pneg %p63
        %p140 = pneg %p60
        %p141 = pneg %p89
        %p142 = pneg %p86
        %s143 = sand.u32 %s76, 1
        %s144 = scalar_lea.sflag [#allocation3], %s143
        %s145 = sand.u32 %s76, 1
        %s146 = smul.addr %s145, 8
        %s147 = scalar_lea.vmem [#allocation2], %s146
        %p148 = scmp.lt.s32.totalorder %s16, 3
        %s149 = scalar_select %p148, %s16, 3
        %s150 = smul.addr %s149, 8
        %s151 = scalar_lea.vmem %s0, %s150
        %p152 = scmp.lt.s32.totalorder %s16, 3
        %s153 = scalar_select %p152, %s16, 3
        %s154 = smul.addr %s153, 8
        %s155 = scalar_lea.vmem %s1, %s154
        %v156 = vld [vmem:[%s151] sm:$0xff]
        %v157 = vld [vmem:[%s155] sm:$0xff]
        %158 = vmax.xlane.f32.xlu0 %v156
        %v159 = vpop.xlane.xlu0 %158
        %v160 = vsub.f32 %v156, %v159
        %v161 = vmul.f32 %v160, 1.442695
        %v162 = vpow.pop %v161
        %163 = vadd.xlane.f32.xlu0 %v162
        %v164 = vpop.xlane.xlu0 %163
        %v165 = vlog2.pop %v164
        %v166 = vmul.f32 %v165, 0.6931472
        %v167 = vadd.f32 %v159, %v166
        %168 = vadd.xlane.f32.xlu0 %v156
        %v169 = vpop.xlane.xlu0 %168
        %v170 = vlaneseq
        %v171 = vand.u32 %v170, 127
        %172 = vset.pattern.permute.xlu0 0
        %173 = vperm.xlu0 %172, %v157
        %v174 = vpop.permute.xlu0 %173
        %vm175 = vcmp.eq.s32.totalorder %v171, %v174
        %v176 = vsel %vm175, %v156, 0.0
        %177 = vadd.xlane.f32.xlu0 %v176
        %v178 = vpop.xlane.xlu0 %177
        %v179 = vsub.f32 %v167, %v178
        %v180 = vmul.f32 %v179, 0.033333335
        %v181 = vmul.f32 %v167, 128.0
        %v182 = vsub.f32 %v181, %v169
        %v183 = vmul.f32 %v182, 0.00026041668
        %v184 = vadd.f32 %v180, %v183
        %v185 = vlaneseq
        %v186 = vshrl.u32 %v185, 7
        %s187 = smul.u32 %s16, 8
        %v188 = vstv %s187
        %v189 = vadd.s32 %v186, %v188
        %vm190 = vcmp.lt.s32.totalorder %v189, 30
        %v191 = vsel %vm190, %v184, 0.0
        %v192 = vrot.slane %v191, 4
        %v193 = vadd.f32 %v191, %v192
        %v194 = vrot.slane %v193, 2
        %v195 = vadd.f32 %v193, %v194
        %v196 = vrot.slane %v195, 1
        %v197 = vadd.f32 %v195, %v196
        %198 = vst [vmem:[%s147] sm:$0xff] %v197
        %s199 = sand.u32 %s76, 1
        %s200 = scalar_lea.sflag [#allocation3], %s199
        %s201 = sand.u32 %s76, 1
        %s202 = smul.addr %s201, 8
        %s203 = scalar_lea.vmem [#allocation2], %s202
        // Predicated region
        $region29: #{tpu_custom_call.1} parent=27 // pred_check
          %p204 = pneg %p86
        $region30: #{tpu_custom_call.1} parent=27 // pred_check_branch
          %206 = sbr.rel (%p204) target = $region32
        $region31: #{tpu_custom_call.1} parent=27 // pred_region
          %s208 = ssub.s32 128, 128
          %209 = vsyncadd %s200, %s208
          %s210 = smul.addr %s16, 128
          %s211 = scalar_lea.hbm %s2, %s210
          %s213 = sshll.u32 %s203, 4
          %s214 = int_to_ptr.vmem [resolvable:$true] %s213
          %216 = dma.vmem_to_hbm [thread:$0]  %s214, 128, %s211, %s200
        $region32: #{tpu_custom_call.1} parent=27 // pred_fallthru
          _
      $region28: #{tpu_custom_call.1} parent=5 // pred_fallthru
        _
      %p217 = scmp.le.s32.totalorder 2, %s11
      // Predicated region
      $region33: #{tpu_custom_call.1} parent=5 // pred_check
        %p218 = pneg %p217
      $region34: #{tpu_custom_call.1} parent=5 // pred_check_branch
        %220 = sbr.rel (%p218) target = $region36
      $region35: #{tpu_custom_call.1} parent=5 // pred_region
        %s221 = ssub.s32 %s11, 2
        // Predicated region
        $region37: #{tpu_custom_call.1} parent=35 // pred_check
          %p222 = pneg %p92
        $region38: #{tpu_custom_call.1} parent=35 // pred_check_branch
          %224 = sbr.rel (%p222) target = $region40
        $region39: #{tpu_custom_call.1} parent=35 // pred_region
          %s225 = sand.u32 %s77, 1
          %s226 = scalar_lea.sflag [#allocation3], %s225
          %s227 = sand.u32 %s77, 1
          %s228 = smul.addr %s227, 8
          %s229 = scalar_lea.vmem [#allocation2], %s228
          %230 = dma.done %s226, 128
        $region40: #{tpu_custom_call.1} parent=35 // pred_fallthru
          _
      $region36: #{tpu_custom_call.1} parent=5 // pred_fallthru
        _
    $region6: #{tpu_custom_call.1} parent=1 // loop_footer
      %s15 = sadd.s32 1, %s11
    $region7: #{tpu_custom_call.1} parent=1 // loop_footer_branch
      %10 = sbr.rel target = $region3
    $region8: #{tpu_custom_call.1} parent=1 // loop_exit
      _
    %231 = vsyncpa [#allocation3], 1
    %s232 = scalar_lea.sflag [#allocation3], 1
    %233 = vsyncpa %s232, 1

</llo_original>
